<compile_context>
chip_gen: v7x
topology: tpu7x:2x2x1
jax: 0.10.0
libtpu: 0.0.40
codegen_flags: <defaults>
</compile_context>

<pallas_src>
import functools

import jax
import jax.numpy as jnp
from jax.experimental import pallas as pl
from jax.experimental.pallas import tpu as pltpu

EPS = 1e-5  # nn.InstanceNorm2d default eps


def _round_up(x, m):
    return ((x + m - 1) // m) * m


def _vmem_limit_bytes():
    """~3/4 of physical VMEM (96 MiB on v5e/v6e, 48 MiB on v7x); safe fallback."""
    try:
        cap = int(getattr(pltpu.get_tpu_info(), "vmem_capacity_bytes", 0))
    except Exception:
        cap = 0
    if cap <= 0:
        cap = 64 * 1024 * 1024
    return min(cap * 3 // 4, 100 * 1024 * 1024)


def _num_tensorcores():
    try:
        dev = jax.devices()[0]
        for attr in ("num_cores", "core_count"):
            v = getattr(dev, attr, None)
            if isinstance(v, int) and v > 0:
                return v
    except Exception:
        pass
    return 1


def _choose_tiling(c_out, k, p, n_batch, in_itemsize, budget, num_tc):
    """Pick (channel block, P tile).  The f32 pre-norm slab must fit VMEM;
    tile_p is capped at 2048 lanes (roofline flat past ~1024, keeps the
    pipeline deep and the last-tile padding small)."""
    c_blk = c_out
    # Shrink channel block (stats are per-channel -> blocks independent) until
    # the per-(sample, channel-block) f32 slab fits ~half the budget.
    while c_blk % 16 == 0 and c_blk * (p + 2048) * 4 > budget // 2:
        c_blk //= 2
    # Single image: split channels once so a second TensorCore gets work.
    if n_batch == 1 and num_tc > 1 and c_blk == c_out and c_blk % 16 == 0:
        c_blk //= 2
    slab = c_blk * (p + 2048) * 4
    fixed = slab + 2 * c_blk * k * in_itemsize            # + resident weight block
    per_col = 2 * k * in_itemsize + 2 * c_blk * 4         # patch-in + out tile (dbl-buffered)
    avail = max(budget - fixed, per_col * 128)
    tile_p = max(128, min(avail // per_col // 128 * 128, 2048, _round_up(p, 128)))
    return int(c_blk), int(tile_p)


def _im2col_nkp(x_nchw, kh, kw, stride, padding, out_dtype):
    """NCHW -> (N, K, P) patches, K ordered (C_in, kh, kw) to match
    weight.reshape(C_out, -1).  Exact sizes (no pad pass), cast fused in."""
    n, c, h, w = x_nchw.shape
    if padding:
        x_nchw = jnp.pad(x_nchw, ((0, 0), (0, 0), (padding, padding), (padding, padding)))
    h_out = (h + 2 * padding - kh) // stride + 1
    w_out = (w + 2 * padding - kw) // stride + 1
    cols = []
    for i in range(kh):
        for j in range(kw):
            cols.append(
                x_nchw[:, :, i:i + stride * h_out:stride, j:j + stride * w_out:stride])
    patches = jnp.stack(cols, axis=2).reshape(n, c * kh * kw, h_out * w_out)
    return patches.astype(out_dtype), h_out, w_out


# ---------------------------------------------------------------------------
# Fused kernel.  Grid = (N, C_out/c_blk, 2 phases, P tiles).
#   phase 0: conv tile -> VMEM slab (MXU, f32 accumulation)
#   phase 1 (j==0): exact two-pass stats over the resident slab
#   phase 1 (all j): normalize + ReLU tile -> output (single HBM write)
# ---------------------------------------------------------------------------
def _fused_conv_in_relu_kernel(w_ref, x_ref, o_ref, scr_ref, mean_ref, istd_ref,
                               *, n_tiles, tile_p, p):
    ph = pl.program_id(2)
    j = pl.program_id(3)
    p_rem = p - (n_tiles - 1) * tile_p     # static; width of the last (ragged) tile
    ragged = p_rem < tile_p

    @pl.when(ph == 0)
    def _conv():
        # (c_blk, K) @ (K, tile_p) on the MXU.
        scr_ref[j] = jnp.dot(w_ref[...], x_ref[0],
                             preferred_element_type=jnp.float32)

    @pl.when(jnp.logical_and(ph == 1, j == 0))
    def _stats():
        c_blk = w_ref.shape[0]
        inv_p = 1.0 / p
        if ragged:
            col = jax.lax.broadcasted_iota(jnp.int32, (c_blk, tile_p), 1)
            tail = col < p_rem             # last input block overruns P: mask garbage
        total = jnp.zeros((c_blk, 1), jnp.float32)
        for t in range(n_tiles):           # static unroll over VMEM-resident tiles
            ys = scr_ref[t]
            if ragged and t == n_tiles - 1:
                ys = jnp.where(tail, ys, 0.0)
            total = total + jnp.sum(ys, axis=1, keepdims=True)
        mean = total * inv_p
        var = jnp.zeros((c_blk, 1), jnp.float32)
        for t in range(n_tiles):           # exact centered variance (no cancellation)
            d = scr_ref[t] - mean
            d = d * d
            if ragged and t == n_tiles - 1:
                d = jnp.where(tail, d, 0.0)
            var = var + jnp.sum(d, axis=1, keepdims=True)
        mean_ref[...] = mean
        istd_ref[...] = jax.lax.rsqrt(var * inv_p + EPS)

    @pl.when(ph == 1)
    def _norm():
        o_ref[0] = jnp.maximum(
            (scr_ref[j] - mean_ref[...]) * istd_ref[...], 0.0).astype(o_ref.dtype)


@functools.partial(
    jax.jit, static_argnames=("kernel_size", "stride", "padding", "compute_dtype"))
def convolution_block(x_nchw, weight, bias, *, kernel_size=3, stride=1, padding=0,
                      compute_dtype=jnp.float32):
    """ConvolutionBlock forward (default config): Conv2d -> InstanceNorm2d -> ReLU.

    x_nchw: (N, C_in, H, W) f32; weight: (C_out, C_in, KH, KW); bias: (C_out,)
    returns (N, C_out, H_out, W_out) f32.
    """
    del bias  # exactly cancelled by InstanceNorm2d(affine=False) mean subtraction
    # TODO(synk): only the default path (base conv, norm='instance',
    # activation='relu', relu_slope=0) is implemented; transpose conv / tanh /
    # leaky-relu / norm='none' (which needs the bias) are not.
    kh = kw = kernel_size
    n, c_in, _, _ = x_nchw.shape
    c_out = int(weight.shape[0])
    k = c_in * kh * kw

    patches, h_out, w_out = _im2col_nkp(x_nchw, kh, kw, stride, padding, compute_dtype)
    p = h_out * w_out
    w_mat = weight.reshape(c_out, k).astype(compute_dtype)

    vmem_limit = _vmem_limit_bytes()
    budget = int(vmem_limit * 0.8)
    in_isz = jnp.dtype(compute_dtype).itemsize
    c_blk, tile_p = _choose_tiling(c_out, k, p, n, in_isz, budget, _num_tensorcores())
    n_tiles = -(-p // tile_p)
    c_blocks = c_out // c_blk

    out = pl.pallas_call(
        functools.partial(_fused_conv_in_relu_kernel,
                          n_tiles=n_tiles, tile_p=tile_p, p=p),
        out_shape=jax.ShapeDtypeStruct((n, c_out, p), jnp.float32),
        grid_spec=pltpu.PrefetchScalarGridSpec(
            num_scalar_prefetch=0,
            grid=(n, c_blocks, 2, n_tiles),
            in_specs=[
                # weight block: resident per channel block
                pl.BlockSpec((c_blk, k), lambda i, c, ph, j: (c, 0)),
                # im2col patch tiles: swept in phase 0, held (no refetch) in phase 1
                pl.BlockSpec((1, k, tile_p),
                             lambda i, c, ph, j: (i, 0, j * (1 - ph) + (n_tiles - 1) * ph)),
            ],
            # Output tiles: pinned to tile 0 during phase 0 (never flushed before
            # being written), swept lane-dense in phase 1 -> exactly one HBM write.
            out_specs=pl.BlockSpec((1, c_blk, tile_p),
                                   lambda i, c, ph, j: (i, c, j * ph)),
            scratch_shapes=[
                pltpu.VMEM((n_tiles, c_blk, tile_p), jnp.float32),  # pre-norm slab
                pltpu.VMEM((c_blk, 1), jnp.float32),                # mean
                pltpu.VMEM((c_blk, 1), jnp.float32),                # inv_std
            ],
        ),
        compiler_params=pltpu.CompilerParams(
            dimension_semantics=("parallel", "parallel", "arbitrary", "arbitrary"),
            vmem_limit_bytes=vmem_limit,
        ),
    )(w_mat, patches)

    # (N, C_out, P) is exact -> free reshape to NCHW (no slice, no transpose).
    return out.reshape(n, c_out, h_out, w_out)


def _reference(x_nchw, weight, bias, stride=1, padding=0):
    """Pure-JAX reference (Conv2d + bias -> InstanceNorm2d -> ReLU)."""
    y = jax.lax.conv_general_dilated(
        x_nchw, weight,
        window_strides=(stride, stride),
        padding=[(padding, padding), (padding, padding)],
        dimension_numbers=("NCHW", "OIHW", "NCHW"),
    ) + bias.reshape(1, -1, 1, 1)
    mean = jnp.mean(y, axis=(2, 3), keepdims=True)
    var = jnp.mean((y - mean) ** 2, axis=(2, 3), keepdims=True)
    return jnp.maximum((y - mean) * jax.lax.rsqrt(var + EPS), 0.0)


if __name__ == "__main__":
    # Small deterministic example: batch=2, filters_in=4, filters_out=8, 16x16.
    key = jax.random.PRNGKey(0)
    kx, kwt, kb = jax.random.split(key, 3)

    N, C_IN, H, W = 2, 4, 16, 16
    C_OUT, KS = 8, 3

    x = jax.random.normal(kx, (N, C_IN, H, W), dtype=jnp.float32)
    weight = 0.1 * jax.random.normal(kwt, (C_OUT, C_IN, KS, KS), dtype=jnp.float32)
    bias = 0.1 * jax.random.normal(kb, (C_OUT,), dtype=jnp.float32)

    ref = jax.block_until_ready(_reference(x, weight, bias))

    # f32 path (tight tolerance).
    out = jax.block_until_ready(
        convolution_block(x, weight, bias, kernel_size=KS, stride=1, padding=0))
    assert out.shape == (N, C_OUT, H - KS + 1, W - KS + 1), out.shape
    assert jnp.allclose(out, ref, atol=1e-4, rtol=1e-4), float(jnp.max(jnp.abs(out - ref)))

    # bf16 MXU path (f32 accumulation + f32 norm math); looser tolerance.
    out_bf16 = jax.block_until_ready(
        convolution_block(x, weight, bias, kernel_size=KS, stride=1, padding=0,
                          compute_dtype=jnp.bfloat16))
    assert jnp.allclose(out_bf16, ref, atol=5e-2, rtol=5e-2), \
        float(jnp.max(jnp.abs(out_bf16 - ref)))

    print("KERNEL_OK")
</pallas_src>

<mosaic_0001>
module attributes {stable_mosaic.version = 11 : i64} {
  func.func @_fused_conv_in_relu_kernel(%arg0: i32, %arg1: i32, %arg2: i32, %arg3: i32, %arg4: memref<8x36xf32, #tpu.memory_space<vmem>>, %arg5: memref<1x36x256xf32, #tpu.memory_space<vmem>>, %arg6: memref<1x8x256xf32, #tpu.memory_space<vmem>>, %arg7: memref<1x8x256xf32, #tpu.memory_space<vmem>>, %arg8: memref<8x1xf32, #tpu.memory_space<vmem>>, %arg9: memref<8x1xf32, #tpu.memory_space<vmem>>) attributes {dimension_semantics = [#tpu.dimension_semantics<parallel>, #tpu.dimension_semantics<parallel>, #tpu.dimension_semantics<arbitrary>, #tpu.dimension_semantics<arbitrary>], iteration_bounds = array<i64: 2, 1, 2, 1>, scalar_prefetch = 0 : i64, scratch_operands = 3 : i64, tpu.core_type = #tpu.core_type<tc>, window_params = [{transform_indices = @transform_0, window_bounds = array<i64: 8, 36>}, {transform_indices = @transform_1, window_bounds = array<i64: 1, 36, 256>}, {transform_indices = @transform_2, window_bounds = array<i64: 1, 8, 256>}]} {
    %c0_i32 = arith.constant 0 : i32
    %0 = arith.cmpi eq, %arg2, %c0_i32 : i32
    %1 = arith.extui %0 : i1 to i32
    %c0_i32_0 = arith.constant 0 : i32
    %2 = arith.cmpi ne, %1, %c0_i32_0 : i32
    scf.if %2 {
      %c0 = arith.constant 0 : index
      %c0_5 = arith.constant 0 : index
      %11 = vector.load %arg4[%c0, %c0_5] : memref<8x36xf32, #tpu.memory_space<vmem>>, vector<8x36xf32>
      %c0_6 = arith.constant 0 : index
      %c0_7 = arith.constant 0 : index
      %c0_8 = arith.constant 0 : index
      %12 = vector.load %arg5[%c0_6, %c0_7, %c0_8] : memref<1x36x256xf32, #tpu.memory_space<vmem>>, vector<1x36x256xf32>
      %13 = vector.shape_cast %12 : vector<1x36x256xf32> to vector<36x256xf32>
      %cst = arith.constant dense<0.000000e+00> : vector<8x256xf32>
      %14 = tpu.matmul %11, %13, %cst {dimension_numbers = #tpu.dot_dimension_numbers<[1], [0], [0], [1], [0, 0, 1, 1], [], []>} : vector<8x36xf32>, vector<36x256xf32>, vector<8x256xf32> -> vector<8x256xf32>
      %15 = arith.index_cast %arg3 : i32 to index
      %c0_9 = arith.constant 0 : index
      %c0_10 = arith.constant 0 : index
      %16 = vector.load %arg7[%15, %c0_9, %c0_10] : memref<1x8x256xf32, #tpu.memory_space<vmem>>, vector<1x8x256xf32>
      %17 = vector.shape_cast %16 : vector<1x8x256xf32> to vector<8x256xf32>
      %18 = vector.shape_cast %14 : vector<8x256xf32> to vector<1x8x256xf32>
      tpu.vector_store %arg7[%15, %c0_9, %c0_10], %18 {strides = array<i32>} : memref<1x8x256xf32, #tpu.memory_space<vmem>>, vector<1x8x256xf32>,
    } else {
    }
    %c1_i32 = arith.constant 1 : i32
    %3 = arith.cmpi eq, %arg2, %c1_i32 : i32
    %c0_i32_1 = arith.constant 0 : i32
    %4 = arith.cmpi eq, %arg3, %c0_i32_1 : i32
    %5 = arith.andi %3, %4 : i1
    %6 = arith.extui %5 : i1 to i32
    %c0_i32_2 = arith.constant 0 : i32
    %7 = arith.cmpi ne, %6, %c0_i32_2 : i32
    scf.if %7 {
      %11 = tpu.iota {dimensions = array<i32: 1>} : vector<8x256xi32>
      %c196_i32 = arith.constant 196 : i32
      %12 = vector.broadcast %c196_i32 : i32 to vector<8x256xi32>
      %13 = arith.cmpi slt, %11, %12 : vector<8x256xi32>
      %cst = arith.constant 0.000000e+00 : f32
      %14 = vector.broadcast %cst : f32 to vector<8x1xf32>
      %c0 = arith.constant 0 : index
      %c0_5 = arith.constant 0 : index
      %c0_6 = arith.constant 0 : index
      %15 = vector.load %arg7[%c0, %c0_5, %c0_6] : memref<1x8x256xf32, #tpu.memory_space<vmem>>, vector<1x8x256xf32>
      %16 = vector.shape_cast %15 : vector<1x8x256xf32> to vector<8x256xf32>
      %cst_7 = arith.constant 0.000000e+00 : f32
      %17 = vector.broadcast %cst_7 : f32 to vector<8x256xf32>
      %18 = arith.select %13, %16, %17 : vector<8x256xi1>, vector<8x256xf32>
      %cst_8 = arith.constant dense<0.000000e+00> : vector<8xf32>
      %19 = vector.multi_reduction <add>, %18, %cst_8 [1] : vector<8x256xf32> to vector<8xf32>
      %20 = vector.shape_cast %19 : vector<8xf32> to vector<8x1xf32>
      %21 = arith.addf %14, %20 : vector<8x1xf32>
      %cst_9 = arith.constant 0.00510204071 : f32
      %22 = vector.broadcast %cst_9 : f32 to vector<8x1xf32>
      %23 = arith.mulf %21, %22 : vector<8x1xf32>
      %cst_10 = arith.constant 0.000000e+00 : f32
      %24 = vector.broadcast %cst_10 : f32 to vector<8x1xf32>
      %c0_11 = arith.constant 0 : index
      %c0_12 = arith.constant 0 : index
      %c0_13 = arith.constant 0 : index
      %25 = vector.load %arg7[%c0_11, %c0_12, %c0_13] : memref<1x8x256xf32, #tpu.memory_space<vmem>>, vector<1x8x256xf32>
      %26 = vector.shape_cast %25 : vector<1x8x256xf32> to vector<8x256xf32>
      %27 = vector.broadcast %23 : vector<8x1xf32> to vector<8x256xf32>
      %28 = arith.subf %26, %27 : vector<8x256xf32>
      %29 = arith.mulf %28, %28 : vector<8x256xf32>
      %cst_14 = arith.constant 0.000000e+00 : f32
      %30 = vector.broadcast %cst_14 : f32 to vector<8x256xf32>
      %31 = arith.select %13, %29, %30 : vector<8x256xi1>, vector<8x256xf32>
      %cst_15 = arith.constant dense<0.000000e+00> : vector<8xf32>
      %32 = vector.multi_reduction <add>, %31, %cst_15 [1] : vector<8x256xf32> to vector<8xf32>
      %33 = vector.shape_cast %32 : vector<8xf32> to vector<8x1xf32>
      %34 = arith.addf %24, %33 : vector<8x1xf32>
      %c0_16 = arith.constant 0 : index
      %c0_17 = arith.constant 0 : index
      %35 = vector.load %arg8[%c0_16, %c0_17] : memref<8x1xf32, #tpu.memory_space<vmem>>, vector<8x1xf32>
      tpu.vector_store %arg8[%c0_16, %c0_17], %23 {strides = array<i32>} : memref<8x1xf32, #tpu.memory_space<vmem>>, vector<8x1xf32>,
      %cst_18 = arith.constant 0.00510204071 : f32
      %36 = vector.broadcast %cst_18 : f32 to vector<8x1xf32>
      %37 = arith.mulf %34, %36 : vector<8x1xf32>
      %cst_19 = arith.constant 9.99999974E-6 : f32
      %38 = vector.broadcast %cst_19 : f32 to vector<8x1xf32>
      %39 = arith.addf %37, %38 : vector<8x1xf32>
      %40 = math.rsqrt %39 : vector<8x1xf32>
      %c0_20 = arith.constant 0 : index
      %c0_21 = arith.constant 0 : index
      %41 = vector.load %arg9[%c0_20, %c0_21] : memref<8x1xf32, #tpu.memory_space<vmem>>, vector<8x1xf32>
      tpu.vector_store %arg9[%c0_20, %c0_21], %40 {strides = array<i32>} : memref<8x1xf32, #tpu.memory_space<vmem>>, vector<8x1xf32>,
    } else {
    }
    %c1_i32_3 = arith.constant 1 : i32
    %8 = arith.cmpi eq, %arg2, %c1_i32_3 : i32
    %9 = arith.extui %8 : i1 to i32
    %c0_i32_4 = arith.constant 0 : i32
    %10 = arith.cmpi ne, %9, %c0_i32_4 : i32
    scf.if %10 {
      %11 = arith.index_cast %arg3 : i32 to index
      %c0 = arith.constant 0 : index
      %c0_5 = arith.constant 0 : index
      %12 = vector.load %arg7[%11, %c0, %c0_5] : memref<1x8x256xf32, #tpu.memory_space<vmem>>, vector<1x8x256xf32>
      %13 = vector.shape_cast %12 : vector<1x8x256xf32> to vector<8x256xf32>
      %c0_6 = arith.constant 0 : index
      %c0_7 = arith.constant 0 : index
      %14 = vector.load %arg8[%c0_6, %c0_7] : memref<8x1xf32, #tpu.memory_space<vmem>>, vector<8x1xf32>
      %15 = vector.broadcast %14 : vector<8x1xf32> to vector<8x256xf32>
      %16 = arith.subf %13, %15 : vector<8x256xf32>
      %c0_8 = arith.constant 0 : index
      %c0_9 = arith.constant 0 : index
      %17 = vector.load %arg9[%c0_8, %c0_9] : memref<8x1xf32, #tpu.memory_space<vmem>>, vector<8x1xf32>
      %18 = vector.broadcast %17 : vector<8x1xf32> to vector<8x256xf32>
      %19 = arith.mulf %16, %18 : vector<8x256xf32>
      %cst = arith.constant 0.000000e+00 : f32
      %20 = vector.broadcast %cst : f32 to vector<8x256xf32>
      %21 = arith.maximumf %19, %20 : vector<8x256xf32>
      %c0_10 = arith.constant 0 : index
      %c0_11 = arith.constant 0 : index
      %c0_12 = arith.constant 0 : index
      %22 = vector.load %arg6[%c0_10, %c0_11, %c0_12] : memref<1x8x256xf32, #tpu.memory_space<vmem>>, vector<1x8x256xf32>
      %23 = vector.shape_cast %22 : vector<1x8x256xf32> to vector<8x256xf32>
      %24 = vector.shape_cast %21 : vector<8x256xf32> to vector<1x8x256xf32>
      tpu.vector_store %arg6[%c0_10, %c0_11, %c0_12], %24 {strides = array<i32>} : memref<1x8x256xf32, #tpu.memory_space<vmem>>, vector<1x8x256xf32>,
    } else {
    }
    return
  }
  func.func @transform_0(%arg0: i32, %arg1: i32, %arg2: i32, %arg3: i32) -> (i32, i32) {
    %c0_i32 = arith.constant 0 : i32
    %c0_i32_0 = arith.constant 0 : i32
    return %arg1, %c0_i32 : i32, i32
  }
  func.func @transform_1(%arg0: i32, %arg1: i32, %arg2: i32, %arg3: i32) -> (i32, i32, i32) {
    %c1_i32 = arith.constant 1 : i32
    %0 = arith.subi %c1_i32, %arg2 : i32
    %1 = arith.muli %arg3, %0 : i32
    %c0_i32 = arith.constant 0 : i32
    %2 = arith.muli %c0_i32, %arg2 : i32
    %3 = arith.addi %1, %2 : i32
    %c0_i32_0 = arith.constant 0 : i32
    %c0_i32_1 = arith.constant 0 : i32
    return %arg0, %c0_i32_0, %3 : i32, i32, i32
  }
  func.func @transform_2(%arg0: i32, %arg1: i32, %arg2: i32, %arg3: i32) -> (i32, i32, i32) {
    %0 = arith.muli %arg3, %arg2 : i32
    %c0_i32 = arith.constant 0 : i32
    return %arg0, %arg1, %0 : i32, i32, i32
  }
}

</mosaic_0001>

<llo_original>
// kernel: convolution_block.1
$region0: #{convolution_block.1}
  #allocation0 [shape = 'u32[]', space=smem, size = 0x4, offset = 0x4, fixed_abs, tag = 'smem constant byte address 0x4 - core index']
  #allocation1 [shape = 'u32[144,128]{1,0:T(1,128)}', space=vmem, size = 0x12000, scoped, tag = 'internal scratch']
  #allocation2 [shape = 'f32[1,8,256]{2,1,0:T(8,128)}', space=vmem, size = 0x2000, scoped, tag = 'scratch operand']
  #allocation3 [shape = 'f32[8,1]{1,0:T(8,128)}', space=vmem, size = 0x1000, scoped, tag = 'scratch operand']
  #allocation4 [shape = 'f32[8,1]{1,0:T(8,128)}', space=vmem, size = 0x1000, scoped, tag = 'scratch operand']
  %s0 = inlined_call_operand.vmem [shape: f32[8,36], index: 0, kind: input, shape index: {}]
  %s1 = inlined_call_operand.vmem [shape: f32[2,36,196], index: 1, kind: input, shape index: {}]
  %s2 = inlined_call_operand.vmem [shape: f32[2,8,196], index: 2, kind: output, shape index: {}]
  %s3 = sld [smem:[#allocation0]]
  $region53: #{convolution_block.1} parent=0
    _
  %s5 = ssub.s32 1, %s3
  %s6 = scalar_select 0, %s5, %s3
  loop: start=0, step=1, limit=6
  $region2: #{convolution_block.1} parent=0 // loop_pre_header
    _
  $region3: #{convolution_block.1} parent=0 // loop_header
    %s8 = sphi 0, %s12
    %p9 = scmp.ge.s32.totalorder %s8, 6
    %s15 = sphi 0, %s41
    %s16 = sphi 0, %s37
    %s17 = sphi 0, %s33
    %s18 = sphi 0, %s29
    %s19 = sphi 0, %s15
    %s20 = sphi 0, %s16
    %s21 = sphi 0, %s17
    %s22 = sphi 0, %s18
    %s23 = sphi 0, %s19
    %s24 = sphi 0, %s20
    %s25 = sphi 0, %s21
    %s26 = sphi 0, %s22
    %s44 = sphi 0, %s46
    %s47 = sphi 0, %s44
    %s48 = sphi 0, %s47
    %s64 = sphi 0, %s48
    %s76 = sphi 0, %s78
    %s79 = sphi 0, %s76
    %s80 = sphi 0, %s79
    %s96 = sphi 0, %s80
    %s108 = sphi 0, %s110
    %s111 = sphi 0, %s108
    %s112 = sphi 0, %s111
    %s128 = sphi 0, %s112
  $region4: #{convolution_block.1} parent=0 // loop_header_branch
    %11 = sbr.rel (%p9) target = $region8
  $region5: #{convolution_block.1} parent=0 // loop_body
    %s13 = ssub.s32 %s8, 1
    %s14 = ssub.s32 %s8, 2
    %s27 = sadd.s32 1, %s18
    %p28 = scmp.ge.s32.totalorder %s27, 1
    %s29 = scalar_select %p28, 0, %s27
    %s30 = sadd.s32 1, %s17
    %s31 = scalar_select %p28, %s30, %s17
    %p32 = scmp.ge.s32.totalorder %s31, 2
    %s33 = scalar_select %p32, 0, %s31
    %s34 = sadd.s32 1, %s16
    %s35 = scalar_select %p32, %s34, %s16
    %p36 = scmp.ge.s32.totalorder %s35, 1
    %s37 = scalar_select %p36, 0, %s35
    %s38 = sadd.s32 1, %s15
    %s39 = scalar_select %p36, %s38, %s15
    %p40 = scmp.ge.s32.totalorder %s39, 2
    %s41 = scalar_select %p40, 0, %s39
    %s42 = ssub.s32 %s16, %s37
    %p43 = scmp.eq.s32.totalorder %s42, 0
    %s45 = sadd.s32 %s44, 1
    %s46 = scalar_select %p43, %s44, %s45
    %p49 = pneg %p43
    %p50 = scmp.eq.s32.totalorder %s8, 3
    %p51 = por %p49, %p50
    %p52 = scmp.ne.s32.totalorder %s44, %s47
    %p53 = scmp.eq.s32.totalorder %s8, 0
    %p54 = por %p52, %p53
    %p55 = scmp.ne.s32.totalorder %s44, %s47
    %p56 = scmp.eq.s32.totalorder %s13, 3
    %p57 = por %p55, %p56
    %p58 = scmp.ne.s32.totalorder %s47, %s48
    %p59 = scmp.eq.s32.totalorder %s13, 0
    %p60 = por %p58, %p59
    %p61 = scmp.ne.s32.totalorder %s47, %s48
    %p62 = scmp.eq.s32.totalorder %s14, 3
    %p63 = por %p61, %p62
    %p65 = scmp.ne.s32.totalorder %s48, %s64
    %p66 = scmp.eq.s32.totalorder %s14, 0
    %p67 = por %p65, %p66
    %s68 = ssub.s32 1, %s17
    %s69 = smul.u32 %s18, %s68
    %s70 = ssub.s32 1, %s33
    %s71 = smul.u32 %s29, %s70
    %s72 = ssub.s32 %s15, %s41
    %s73 = ssub.s32 %s69, %s71
    %s74 = sor.u32 %s72, %s73
    %p75 = scmp.eq.s32.totalorder %s74, 0
    %s77 = sadd.s32 %s76, 1
    %s78 = scalar_select %p75, %s76, %s77
    %p81 = pneg %p75
    %p82 = scmp.eq.s32.totalorder %s8, 3
    %p83 = por %p81, %p82
    %p84 = scmp.ne.s32.totalorder %s76, %s79
    %p85 = scmp.eq.s32.totalorder %s8, 0
    %p86 = por %p84, %p85
    %p87 = scmp.ne.s32.totalorder %s76, %s79
    %p88 = scmp.eq.s32.totalorder %s13, 3
    %p89 = por %p87, %p88
    %p90 = scmp.ne.s32.totalorder %s79, %s80
    %p91 = scmp.eq.s32.totalorder %s13, 0
    %p92 = por %p90, %p91
    %p93 = scmp.ne.s32.totalorder %s79, %s80
    %p94 = scmp.eq.s32.totalorder %s14, 3
    %p95 = por %p93, %p94
    %p97 = scmp.ne.s32.totalorder %s80, %s96
    %p98 = scmp.eq.s32.totalorder %s14, 0
    %p99 = por %p97, %p98
    %s100 = smul.u32 %s18, %s17
    %s101 = smul.u32 %s29, %s33
    %s102 = ssub.s32 %s15, %s41
    %s103 = ssub.s32 %s16, %s37
    %s104 = sor.u32 %s102, %s103
    %s105 = ssub.s32 %s100, %s101
    %s106 = sor.u32 %s104, %s105
    %p107 = scmp.eq.s32.totalorder %s106, 0
    %s109 = sadd.s32 %s108, 1
    %s110 = scalar_select %p107, %s108, %s109
    %p113 = pneg %p107
    %p114 = scmp.eq.s32.totalorder %s8, 3
    %p115 = por %p113, %p114
    %p116 = scmp.ne.s32.totalorder %s108, %s111
    %p117 = scmp.eq.s32.totalorder %s8, 0
    %p118 = por %p116, %p117
    %p119 = scmp.ne.s32.totalorder %s108, %s111
    %p120 = scmp.eq.s32.totalorder %s13, 3
    %p121 = por %p119, %p120
    %p122 = scmp.ne.s32.totalorder %s111, %s112
    %p123 = scmp.eq.s32.totalorder %s13, 0
    %p124 = por %p122, %p123
    %p125 = scmp.ne.s32.totalorder %s111, %s112
    %p126 = scmp.eq.s32.totalorder %s14, 3
    %p127 = por %p125, %p126
    %p129 = scmp.ne.s32.totalorder %s112, %s128
    %p130 = scmp.eq.s32.totalorder %s14, 0
    %p131 = por %p129, %p130
    %p132 = scmp.le.s32.totalorder 1, %s8
    %p133 = scmp.lt.s32.totalorder %s8, 5
    %p134 = pnand %p132, %p133
    %p135 = pneg %p134
    // Predicated region
    $region9: #{convolution_block.1} parent=5 // pred_check
      _
    $region10: #{convolution_block.1} parent=5 // pred_check_branch
      %137 = sbr.rel (%p134) target = $region12
    $region11: #{convolution_block.1} parent=5 // pred_region
      %s138 = ssub.s32 %s8, 1
      // Predicated region
      $region13: #{convolution_block.1} parent=11 // pred_check
        %p139 = pneg %p60
      $region14: #{convolution_block.1} parent=11 // pred_check_branch
        %141 = sbr.rel (%p139) target = $region16
      $region15: #{convolution_block.1} parent=11 // pred_region
        %p142 = scmp.lt.s32.totalorder %s20, 0
        %s143 = scalar_select %p142, %s20, 0
        %s144 = smul.addr %s143, 8
        %s145 = scalar_lea.vmem %s0, %s144
      $region16: #{convolution_block.1} parent=11 // pred_fallthru
        _
    $region12: #{convolution_block.1} parent=5 // pred_fallthru
      _
    %p146 = scmp.lt.s32.totalorder %s8, 4
    // Predicated region
    $region17: #{convolution_block.1} parent=5 // pred_check
      %p147 = pneg %p146
    $region18: #{convolution_block.1} parent=5 // pred_check_branch
      %149 = sbr.rel (%p147) target = $region20
    $region19: #{convolution_block.1} parent=5 // pred_region
      // Predicated region
      $region21: #{convolution_block.1} parent=19 // pred_check
        %p150 = pneg %p86
      $region22: #{convolution_block.1} parent=19 // pred_check_branch
        %152 = sbr.rel (%p150) target = $region24
      $region23: #{convolution_block.1} parent=19 // pred_region
        %s153 = ssub.s32 1, %s17
        %s154 = smul.u32 %s18, %s153
        %s155 = smul.u32 2, %s154
        %p156 = scmp.lt.s32.totalorder %s15, 1
        %s157 = scalar_select %p156, %s15, 1
        %p158 = scmp.lt.s32.totalorder %s155, 1
        %s159 = scalar_select %p158, %s155, 1
        %s160 = smul.addr %s157, 10
        %s161 = sadd.s32 %s159, %s160
        %s162 = smul.addr %s161, 8
        %s163 = scalar_lea.vmem %s1, %s162
        %s164 = ssub.s32 1, %s17
        %s165 = smul.u32 %s18, %s164
        %s166 = smul.u32 2, %s165
      $region24: #{convolution_block.1} parent=19 // pred_fallthru
        _
    $region20: #{convolution_block.1} parent=5 // pred_fallthru
      _
    %p167 = scmp.le.s32.totalorder 1, %s8
    %p168 = scmp.lt.s32.totalorder %s8, 5
    %p169 = pnand %p167, %p168
    %p170 = pneg %p169
    // Predicated region
    $region25: #{convolution_block.1} parent=5 // pred_check
      _
    $region26: #{convolution_block.1} parent=5 // pred_check_branch
      %172 = sbr.rel (%p169) target = $region28
    $region27: #{convolution_block.1} parent=5 // pred_region
      %s173 = ssub.s32 %s8, 1
      %p174 = scmp.lt.s32.totalorder %s20, 0
      %s175 = scalar_select %p174, %s20, 0
      %s176 = smul.addr %s175, 8
      %s177 = scalar_lea.vmem %s0, %s176
      %p178 = pneg %p60
      %p179 = pneg %p57
      %s180 = ssub.s32 1, %s21
      %s181 = smul.u32 %s22, %s180
      %s182 = smul.u32 2, %s181
      %p183 = scmp.lt.s32.totalorder %s19, 1
      %s184 = scalar_select %p183, %s19, 1
      %p185 = scmp.lt.s32.totalorder %s182, 1
      %s186 = scalar_select %p185, %s182, 1
      %s187 = smul.addr %s184, 10
      %s188 = sadd.s32 %s186, %s187
      %s189 = smul.addr %s188, 8
      %s190 = scalar_lea.vmem %s1, %s189
      %p191 = pneg %p92
      %p192 = pneg %p89
      %p193 = pneg %p124
      %p194 = pneg %p121
      %s195 = smul.u32 %s22, %s21
      %s196 = smul.u32 2, %s195
      %p197 = scmp.lt.s32.totalorder %s19, 1
      %s198 = scalar_select %p197, %s19, 1
      %p199 = scmp.lt.s32.totalorder %s20, 0
      %s200 = scalar_select %p199, %s20, 0
      %p201 = scmp.lt.s32.totalorder %s196, 1
      %s202 = scalar_select %p201, %s196, 1
      %s203 = smul.addr %s200, 2
      %s204 = sadd.s32 %s202, %s203
      %s205 = smul.addr %s198, 2
      %s206 = sadd.s32 %s204, %s205
      %s207 = smul.addr %s206, 8
      %s208 = scalar_lea.vmem %s2, %s207
      %p209 = scmp.lt.s32.totalorder %s20, 0
      %s210 = scalar_select %p209, %s20, 0
      %s211 = smul.addr %s210, 8
      %s212 = scalar_lea.vmem %s0, %s211
      %s213 = ssub.s32 1, %s21
      %s214 = smul.u32 %s22, %s213
      %s215 = smul.u32 2, %s214
      %p216 = scmp.lt.s32.totalorder %s19, 1
      %s217 = scalar_select %p216, %s19, 1
      %p218 = scmp.lt.s32.totalorder %s215, 1
      %s219 = scalar_select %p218, %s215, 1
      %s220 = smul.addr %s217, 10
      %s221 = sadd.s32 %s219, %s220
      %s222 = smul.addr %s221, 8
      %s223 = scalar_lea.vmem %s1, %s222
      %s224 = ssub.s32 1, %s21
      %s225 = smul.u32 %s22, %s224
      %s226 = smul.u32 2, %s225
      %s227 = smul.u32 %s22, %s21
      %s228 = smul.u32 2, %s227
      %p229 = scmp.lt.s32.totalorder %s19, 1
      %s230 = scalar_select %p229, %s19, 1
      %p231 = scmp.lt.s32.totalorder %s20, 0
      %s232 = scalar_select %p231, %s20, 0
      %p233 = scmp.lt.s32.totalorder %s228, 1
      %s234 = scalar_select %p233, %s228, 1
      %s235 = smul.addr %s232, 2
      %s236 = sadd.s32 %s234, %s235
      %s237 = smul.addr %s230, 2
      %s238 = sadd.s32 %s236, %s237
      %s239 = smul.addr %s238, 8
      %s240 = scalar_lea.vmem %s2, %s239
      %s241 = smul.u32 %s22, %s21
      %s242 = smul.u32 2, %s241
      %p243 = scmp.eq.s32.totalorder %s21, 0
      // Predicated region
      $region29: #{convolution_block.1} parent=27 // pred_check
        %p244 = pneg %p243
      $region30: #{convolution_block.1} parent=27 // pred_check_branch
        %246 = sbr.rel (%p244) target = $region32
      $region31: #{convolution_block.1} parent=27 // pred_region
        %v247 = vld [vmem:[%s212] sm:$0xff]
        %v248 = vld [vmem:[%s223] sm:$0xff]
        %v249 = vld [vmem:[%s223 + $0x8] sm:$0xff]
        %v250 = vld [vmem:[%s223 + $0x10] sm:$0xff]
        %v251 = vld [vmem:[%s223 + $0x18] sm:$0xff]
        %v252 = vld [vmem:[%s223 + $0x20] sm:$0xff]
        %v253 = vld [vmem:[%s223 + $0x28] sm:$0xff]
        %v254 = vld [vmem:[%s223 + $0x30] sm:$0xff]
        %v255 = vld [vmem:[%s223 + $0x38] sm:$0xff]
        %v256 = vld [vmem:[%s223 + $0x40] sm:$0xf]
        %v257 = vld [vmem:[%s223 + $0x48] sm:$0xf]
        %vm258 = vcmask 293888
        %v260 = vsel %vm258, %v247, 0
        %vm262 = vcmask 1043456
        %v264 = vsel %vm262, %v256, 0
        %v267 = vsel %vm262, %v257, 0
        %269 = vmatprep.subr.mxu0 %v249
        %270 = vmatpush1.msra.mxu0 %v248
        %271 = vmatprep.subr.mxu0 %v251
        %272 = vmatpush1.msra.mxu0 %v250
        %273 = vmatprep.subr.mxu0 %v253
        %274 = vmatpush1.msra.mxu0 %v252
        %275 = vmatprep.subr.mxu0 %v255
        %276 = vmatpush1.msra.mxu0 %v254
        %277 = vmatprep.subr.mxu0 %v267
        %278 = vmatpush1.msra.mxu0 %v264
        %279 = vmatprep.subr.mxu0 0.0
        %280 = vmatpush1.msra.mxu0 0.0
        %281 = vmatprep.subr.mxu0 0.0
        %282 = vmatpush1.msra.mxu0 0.0
        %283 = vmatprep.subr.mxu0 0.0
        %284 = vmatpush1.msra.mxu0 0.0
        %285 = vmatprep.subr.mxu0 0.0
        %286 = vmatpush1.msra.mxu0 0.0
        %287 = vmatprep.subr.mxu0 0.0
        %288 = vmatpush1.msra.mxu0 0.0
        %289 = vmatprep.subr.mxu0 0.0
        %290 = vmatpush1.msra.mxu0 0.0
        %291 = vmatprep.subr.mxu0 0.0
        %292 = vmatpush1.msra.mxu0 0.0
        %293 = vmatprep.subr.mxu0 0.0
        %294 = vmatpush1.msra.mxu0 0.0
        %295 = vmatprep.subr.mxu0 0.0
        %296 = vmatpush1.msra.mxu0 0.0
        %297 = vmatprep.subr.mxu0 0.0
        %298 = vmatpush1.msra.mxu0 0.0
        %299 = vmatprep.subr.mxu0 0.0
        %300 = vmatpush1.msra.mxu0 0.0
        %301 = vmatprep.subr.mxu0 0.0
        %302 = vmatpush1.msra.mxu0 0.0
        %303 = vmatprep.subr.mxu0 0.0
        %304 = vmatpush1.msra.mxu0 0.0
        %305 = vmatprep.subr.mxu0 0.0
        %306 = vmatpush1.msra.mxu0 0.0
        %307 = vmatprep.subr.mxu0 0.0
        %308 = vmatpush1.msra.mxu0 0.0
        %309 = vmatprep.subr.mxu0 0.0
        %310 = vmatpush1.msra.mxu0 0.0
        %311 = vmatprep.subr.mxu0 0.0
        %312 = vmatpush1.msra.mxu0 0.0
        %313 = vmatprep.subr.mxu0 0.0
        %314 = vmatpush1.msra.mxu0 0.0
        %315 = vmatprep.subr.mxu0 0.0
        %316 = vmatpush1.msra.mxu0 0.0
        %317 = vmatprep.subr.mxu0 0.0
        %318 = vmatpush1.msra.mxu0 0.0
        %319 = vmatprep.subr.mxu0 0.0
        %320 = vmatpush1.msra.mxu0 0.0
        %321 = vmatprep.subr.mxu0 0.0
        %322 = vmatpush1.msra.mxu0 0.0
        %323 = vmatprep.subr.mxu0 0.0
        %324 = vmatpush1.msra.mxu0 0.0
        %325 = vmatprep.subr.mxu0 0.0
        %326 = vmatpush1.msra.mxu0 0.0
        %327 = vmatprep.subr.mxu0 0.0
        %328 = vmatpush1.msra.mxu0 0.0
        %329 = vmatprep.subr.mxu0 0.0
        %330 = vmatpush1.msra.mxu0 0.0
        %331 = vmatprep.subr.mxu0 0.0
        %332 = vmatpush1.msra.mxu0 0.0
        %333 = vmatprep.mubr.f32.mxu0 0.0
        %334 = vmatmul.mubr.f32.gmra.mrb[0].mxu0 %v260
        %v335 = vpop.f32.mrb[0].mxu0
        %v336 = vadd.f32 0.0, %v335
        %v337 = vpop.f32.mrb[0].mxu0
        %v338 = vadd.f32 0.0, %v337
        %339 = vdwg.mxu0
        %s340 = smul.u32 %s22, 2
        %s341 = smul.addr %s340, 8
        %s342 = scalar_lea.vmem [#allocation2], %s341
        %343 = vst [vmem:[%s342] sm:$0xff] %v336
        %344 = vst [vmem:[%s342 + $0x8] sm:$0xff] %v338
      $region32: #{convolution_block.1} parent=27 // pred_fallthru
        _
      %p345 = scmp.eq.s32.totalorder %s21, 1
      %p346 = scmp.eq.s32.totalorder %s22, 0
      %p347 = pnand %p345, %p346
      %p348 = pneg %p347
      // Predicated region
      $region33: #{convolution_block.1} parent=27 // pred_check
        _
      $region34: #{convolution_block.1} parent=27 // pred_check_branch
        %350 = sbr.rel (%p347) target = $region36
      $region35: #{convolution_block.1} parent=27 // pred_region
        %v351 = vlaneseq
        %v352 = vand.u32 %v351, 127
        %v353 = vadd.s32 %v352, 128
        %vm354 = vcmp.lt.s32.totalorder %v352, 196
        %vm355 = vcmp.lt.s32.totalorder %v353, 196
        %v356 = vld [vmem:[#allocation2] sm:$0xff]
        %v357 = vld [vmem:[#allocation2 + $0x8] sm:$0xff]
        %v358 = vsel %vm354, %v356, 0.0
        %v359 = vsel %vm355, %v357, 0.0
        %v360 = vadd.f32 %v358, %v359
        %361 = vadd.xlane.f32.xlu0 %v360
        %v362 = vpop.xlane.xlu0 %361
        %v363 = vadd.f32 %v362, 0.0
        %v364 = vmul.f32 %v363, 0.0051020407
        %v365 = vsub.f32 %v356, %v364
        %v366 = vsub.f32 %v357, %v364
        %v367 = vmul.f32 %v365, %v365
        %v368 = vmul.f32 %v366, %v366
        %v369 = vsel %vm354, %v367, 0.0
        %v370 = vsel %vm355, %v368, 0.0
        %v371 = vadd.f32 %v369, %v370
        %372 = vadd.xlane.f32.xlu0 %v371
        %v373 = vpop.xlane.xlu0 %372
        %v374 = vadd.f32 %v373, 0.0
        %vm375 = vcmask 7168
        %376 = vst.msk [vmem:[#allocation3] sm:$0xff] %vm375, %v364
        %v377 = vmul.f32 %v374, 0.0051020407
        %v378 = vadd.f32 %v377, 1e-05
        %v379 = vrsqrt.pop %v378
        %380 = vst.msk [vmem:[#allocation4] sm:$0xff] %vm375, %v379
      $region36: #{convolution_block.1} parent=27 // pred_fallthru
        _
      // Predicated region
      $region37: #{convolution_block.1} parent=27 // pred_check
        %p381 = pneg %p345
      $region38: #{convolution_block.1} parent=27 // pred_check_branch
        %383 = sbr.rel (%p381) target = $region40
      $region39: #{convolution_block.1} parent=27 // pred_region
        %s384 = smul.u32 %s22, 2
        %s385 = smul.addr %s384, 8
        %s386 = scalar_lea.vmem [#allocation2], %s385
        %v387 = vld [vmem:[%s386] sm:$0xff]
        %v388 = vld [vmem:[%s386 + $0x8] sm:$0xff]
        %v389 = vld [vmem:[#allocation3] sm:$0xff]
        %391 = vset.pattern.permute.xlu0 0
        %392 = vperm.xlu0 %391, %v389
        %v393 = vpop.permute.xlu0 %392
        %v395 = vsub.f32 %v387, %v393
        %v396 = vsub.f32 %v388, %v393
        %v397 = vld [vmem:[#allocation4] sm:$0xff]
        %399 = vset.pattern.permute.xlu0 0
        %400 = vperm.xlu0 %399, %v397
        %v401 = vpop.permute.xlu0 %400
        %v403 = vmul.f32 %v395, %v401
        %v404 = vmul.f32 %v396, %v401
        %v405 = vmax.f32 %v403, 0.0
        %v406 = vmax.f32 %v404, 0.0
        %407 = vst [vmem:[%s240] sm:$0xff] %v405
        %408 = vst [vmem:[%s240 + $0x8] sm:$0xff] %v406
      $region40: #{convolution_block.1} parent=27 // pred_fallthru
        _
      %s409 = smul.u32 %s22, %s21
      %s410 = smul.u32 2, %s409
      %p411 = scmp.lt.s32.totalorder %s19, 1
      %s412 = scalar_select %p411, %s19, 1
      %p413 = scmp.lt.s32.totalorder %s20, 0
      %s414 = scalar_select %p413, %s20, 0
      %p415 = scmp.lt.s32.totalorder %s410, 1
      %s416 = scalar_select %p415, %s410, 1
      %s417 = smul.addr %s414, 2
      %s418 = sadd.s32 %s416, %s417
      %s419 = smul.addr %s412, 2
      %s420 = sadd.s32 %s418, %s419
      %s421 = smul.addr %s420, 8
      %s422 = scalar_lea.vmem %s2, %s421
      // Predicated region
      $region41: #{convolution_block.1} parent=27 // pred_check
        %p423 = pneg %p121
      $region42: #{convolution_block.1} parent=27 // pred_check_branch
        %425 = sbr.rel (%p423) target = $region44
      $region43: #{convolution_block.1} parent=27 // pred_region
        %s426 = smul.u32 %s22, %s21
        %s427 = smul.u32 2, %s426
      $region44: #{convolution_block.1} parent=27 // pred_fallthru
        _
    $region28: #{convolution_block.1} parent=5 // pred_fallthru
      _
    %p428 = scmp.le.s32.totalorder 2, %s8
    // Predicated region
    $region45: #{convolution_block.1} parent=5 // pred_check
      %p429 = pneg %p428
    $region46: #{convolution_block.1} parent=5 // pred_check_branch
      %431 = sbr.rel (%p429) target = $region48
    $region47: #{convolution_block.1} parent=5 // pred_region
      %s432 = ssub.s32 %s8, 2
      // Predicated region
      $region49: #{convolution_block.1} parent=47 // pred_check
        %p433 = pneg %p127
      $region50: #{convolution_block.1} parent=47 // pred_check_branch
        %435 = sbr.rel (%p433) target = $region52
      $region51: #{convolution_block.1} parent=47 // pred_region
        %s436 = smul.u32 %s26, %s25
        %s437 = smul.u32 2, %s436
        %p438 = scmp.lt.s32.totalorder %s23, 1
        %s439 = scalar_select %p438, %s23, 1
        %p440 = scmp.lt.s32.totalorder %s24, 0
        %s441 = scalar_select %p440, %s24, 0
        %p442 = scmp.lt.s32.totalorder %s437, 1
        %s443 = scalar_select %p442, %s437, 1
        %s444 = smul.addr %s441, 2
        %s445 = sadd.s32 %s443, %s444
        %s446 = smul.addr %s439, 2
        %s447 = sadd.s32 %s445, %s446
        %s448 = smul.addr %s447, 8
        %s449 = scalar_lea.vmem %s2, %s448
      $region52: #{convolution_block.1} parent=47 // pred_fallthru
        _
    $region48: #{convolution_block.1} parent=5 // pred_fallthru
      _
  $region6: #{convolution_block.1} parent=0 // loop_footer
    %s12 = sadd.s32 1, %s8
  $region7: #{convolution_block.1} parent=0 // loop_footer_branch
    %7 = sbr.rel target = $region3
  $region8: #{convolution_block.1} parent=0 // loop_exit
    _

</llo_original>
